<compile_context>
chip_gen: v5e
topology: v5e:2x2
jax: 0.10.0
libtpu: 0.0.40
codegen_flags: <defaults>
</compile_context>

<pallas_src>
import jax
import jax.numpy as jnp
from jax.experimental import pallas as pl
from jax.experimental.pallas import tpu as pltpu

_LANES = 128
# Combined raw bytes under which both tensors go through ONE grid-less fused
# call.  Double-buffered in+out tiles cost ~4x this (<= 8 MiB): safe on v5e
# (16 MiB scoped), v6e (32 MiB) and v7x (32 MiB scoped of 64 MiB physical).
_SMALL_FUSED_BYTES = 2 * 1024 * 1024
# Rows per tile for the large-tensor path: (2048, 128) f32 = 1 MiB per block.
# Big enough (>512 rows) to sit near the HBM roofline on every generation,
# small enough to never need vmem_limit_bytes overrides (important for v7x).
_TILE_ROWS = 2048


def _copy_kernel(x_ref, o_ref):
    # Pure pass-through of the current tile.
    o_ref[...] = x_ref[...]


def _fused_copy_kernel(img_ref, txt_ref, img_o_ref, txt_o_ref):
    # One launch moves both tensors: the per-call dispatch cost dominates for
    # small feature maps, so fusing roughly halves the wall time.
    img_o_ref[...] = img_ref[...]
    txt_o_ref[...] = txt_ref[...]


def _lane_dense_2d(x: jax.Array) -> jax.Array:
    """Return a 2-D view of `x` with a lane-dense last dim when possible.

    (-1, 128) turns narrow last dims (W=16, embed=32, ...) into full-lane rows;
    falls back to (-1, last_dim) when the element count isn't a multiple of 128
    (full-array blocks remain legal in that case).
    """
    total = x.size
    if total % _LANES == 0:
        return x.reshape(total // _LANES, _LANES)
    if x.ndim >= 2:
        return x.reshape(-1, x.shape[-1])
    return x.reshape(1, max(total, 1))


def _fused_identity_small(img2d: jax.Array, txt2d: jax.Array):
    """Both tensors through one grid-less pallas_call; outputs alias inputs."""
    return pl.pallas_call(
        _fused_copy_kernel,
        out_shape=(
            jax.ShapeDtypeStruct(img2d.shape, img2d.dtype),
            jax.ShapeDtypeStruct(txt2d.shape, txt2d.dtype),
        ),
        in_specs=[
            pl.BlockSpec(img2d.shape, lambda: (0, 0)),
            pl.BlockSpec(txt2d.shape, lambda: (0, 0)),
        ],
        out_specs=(
            pl.BlockSpec(img2d.shape, lambda: (0, 0)),
            pl.BlockSpec(txt2d.shape, lambda: (0, 0)),
        ),
        # Identity: output buffers alias the (temporary, reshaped) inputs so no
        # extra HBM allocation / round-trip is required when donation is legal.
        input_output_aliases={0: 0, 1: 1},
    )(img2d, txt2d)


def _identity_single(x2d: jax.Array) -> jax.Array:
    """Per-tensor identity copy; row-tiled grid when the tensor is large."""
    rows, lanes = x2d.shape
    if rows <= _TILE_ROWS:
        return pl.pallas_call(
            _copy_kernel,
            out_shape=jax.ShapeDtypeStruct(x2d.shape, x2d.dtype),
            in_specs=[pl.BlockSpec(x2d.shape, lambda: (0, 0))],
            out_specs=pl.BlockSpec(x2d.shape, lambda: (0, 0)),
            input_output_aliases={0: 0},
        )(x2d)

    # Large tensor: 1-D grid over row tiles.  (_TILE_ROWS, lanes) satisfies the
    # (8, 128) rule (_TILE_ROWS % 8 == 0; lanes is 128 or the full last dim).
    # "parallel" lets megacore / v7x's two TCs each take half the rows.
    grid = (pl.cdiv(rows, _TILE_ROWS),)
    return pl.pallas_call(
        _copy_kernel,
        out_shape=jax.ShapeDtypeStruct(x2d.shape, x2d.dtype),
        grid=grid,
        in_specs=[pl.BlockSpec((_TILE_ROWS, lanes), lambda i: (i, 0))],
        out_specs=pl.BlockSpec((_TILE_ROWS, lanes), lambda i: (i, 0)),
        input_output_aliases={0: 0},
        compiler_params=pltpu.CompilerParams(
            dimension_semantics=("parallel",)),
    )(x2d)


def identity_fusion_forward(img_feats: jax.Array, text_feats: jax.Array):
    """Pallas equivalent of IdentityFusionBLock.forward."""
    img2d = _lane_dense_2d(img_feats)
    txt2d = _lane_dense_2d(text_feats)

    if img2d.nbytes + txt2d.nbytes <= _SMALL_FUSED_BYTES:
        img_o2d, txt_o2d = _fused_identity_small(img2d, txt2d)
    else:
        img_o2d = _identity_single(img2d)
        txt_o2d = _identity_single(txt2d)

    return img_o2d.reshape(img_feats.shape), txt_o2d.reshape(text_feats.shape)


class IdentityFusionBlockPallas:
    """JAX/Pallas port of IdentityFusionBLock (no parameters, no fusion)."""

    def __init__(self, widen_factor: float, last_img_channel: int,
                 use_pallas: bool = True):
        # The PyTorch __init__ creates no parameters, so neither do we.
        del widen_factor, last_img_channel
        self._use_pallas = use_pallas

    def __call__(self, img_feats, text_feats):
        if not self._use_pallas:
            # Mathematically optimal identity: zero bytes moved, zero launches.
            return (img_feats, text_feats)
        return identity_fusion_forward(img_feats, text_feats)


if __name__ == "__main__":
    key = jax.random.PRNGKey(0)
    k_img, k_txt = jax.random.split(key)

    # Shapes implied by the module's forward:
    #   img_feats:  NCHW feature map; text_feats: (B, num_words, embed_dim).
    img_feats = jax.random.normal(k_img, (2, 4, 16, 16), dtype=jnp.float32)
    text_feats = jax.random.normal(k_txt, (2, 8, 32), dtype=jnp.float32)

    block = IdentityFusionBlockPallas(widen_factor=0.5, last_img_channel=4)
    out_img, out_txt = block(img_feats, text_feats)
    jax.block_until_ready((out_img, out_txt))

    # Verify exact identity semantics.
    assert out_img.shape == img_feats.shape and out_img.dtype == img_feats.dtype
    assert out_txt.shape == text_feats.shape and out_txt.dtype == text_feats.dtype
    assert bool(jnp.all(out_img == img_feats))
    assert bool(jnp.all(out_txt == text_feats))

    print("KERNEL_OK")
</pallas_src>

<mosaic_0001>
module attributes {stable_mosaic.version = 11 : i64} {
  func.func @_fused_copy_kernel(%arg0: memref<16x128xf32, #tpu.memory_space<vmem>>, %arg1: memref<4x128xf32, #tpu.memory_space<vmem>>, %arg2: memref<16x128xf32, #tpu.memory_space<vmem>>, %arg3: memref<4x128xf32, #tpu.memory_space<vmem>>) attributes {dimension_semantics = [], scalar_prefetch = 0 : i64, scratch_operands = 0 : i64, tpu.core_type = #tpu.core_type<tc>} {
    %c0 = arith.constant 0 : index
    %c0_0 = arith.constant 0 : index
    %0 = vector.load %arg0[%c0, %c0_0] : memref<16x128xf32, #tpu.memory_space<vmem>>, vector<16x128xf32>
    %c0_1 = arith.constant 0 : index
    %c0_2 = arith.constant 0 : index
    %1 = vector.load %arg2[%c0_1, %c0_2] : memref<16x128xf32, #tpu.memory_space<vmem>>, vector<16x128xf32>
    tpu.vector_store %arg2[%c0_1, %c0_2], %0 {strides = array<i32>} : memref<16x128xf32, #tpu.memory_space<vmem>>, vector<16x128xf32>,
    %c0_3 = arith.constant 0 : index
    %c0_4 = arith.constant 0 : index
    %2 = vector.load %arg1[%c0_3, %c0_4] : memref<4x128xf32, #tpu.memory_space<vmem>>, vector<4x128xf32>
    %c0_5 = arith.constant 0 : index
    %c0_6 = arith.constant 0 : index
    %3 = vector.load %arg3[%c0_5, %c0_6] : memref<4x128xf32, #tpu.memory_space<vmem>>, vector<4x128xf32>
    tpu.vector_store %arg3[%c0_5, %c0_6], %2 {strides = array<i32>} : memref<4x128xf32, #tpu.memory_space<vmem>>, vector<4x128xf32>,
    return
  }
}

</mosaic_0001>

<llo_original>
// kernel: tpu_custom_call.1
$region0: #{tpu_custom_call.1}
  #allocation0 [shape = 'u32[]', space=smem, size = 0x4, offset = 0x4, fixed_abs, tag = 'smem constant byte address 0x4 - core index']
  #allocation1 [shape = 'u32[72,128]{1,0:T(1,128)}', space=vmem, size = 0x9000, scoped, tag = 'internal scratch']
  %s0 = inlined_call_operand.hbm [shape: f32[16,128], index: 0, kind: input, shape index: {}, may-alias: {0,2}]
  %s1 = inlined_call_operand.hbm [shape: f32[4,128], index: 1, kind: input, shape index: {}, may-alias: {1,3}]
  %s2 = inlined_call_operand.hbm [shape: f32[16,128], index: 2, kind: output, shape index: {0}, may-alias: {0,2}]
  %s3 = inlined_call_operand.hbm [shape: f32[4,128], index: 3, kind: output, shape index: {1}, may-alias: {1,3}]
  %4 = xla_tuple %s2, %s3
  %s5 = sld [smem:[#allocation0]]
  $region34: #{tpu_custom_call.1} parent=0
    _
  %s7 = ssub.s32 1, %s5
  %s8 = scalar_select 0, %s7, %s5
  $region1: #{tpu_custom_call.1} parent=0
    #allocation2 [shape = 'u8[8192]{0}', space=vmem, size = 0x2000, scoped, tag = 'input window, operand 0, single buffered']
    #allocation3 [shape = 's32[1]{0}', space=sflag, size = 0x4, scoped, tag = 'scoped memory for tpu_custom_call.1']
    #allocation4 [shape = 's32[1]{0}', space=sflag, size = 0x4, scoped, tag = 'scoped memory for tpu_custom_call.1']
    #allocation5 [shape = 'u8[2048]{0}', space=vmem, size = 0x800, scoped, tag = 'input window, operand 1, single buffered']
    #allocation6 [shape = 's32[1]{0}', space=sflag, size = 0x4, scoped, tag = 'scoped memory for tpu_custom_call.1']
    #allocation7 [shape = 'u8[8192]{0}', space=vmem, size = 0x2000, scoped, tag = 'output window, operand 0, single buffered']
    #allocation8 [shape = 'u8[2048]{0}', space=vmem, size = 0x800, scoped, tag = 'output window, operand 1, single buffered']
    #allocation9 [shape = 's32[1]{0}', space=sflag, size = 0x4, scoped, tag = 'scoped memory for tpu_custom_call.1']
    %9 = vsyncpa [#allocation3], 0
    %10 = vsyncpa [#allocation6], 0
    %11 = vsyncpa [#allocation4], 0
    %12 = vsyncpa [#allocation9], 0
    // Predicated region
    $region2: #{tpu_custom_call.1} parent=1 // pred_check
      _
    $region3: #{tpu_custom_call.1} parent=1 // pred_check_branch
      %14 = sbr.rel (0) target = $region5
    $region4: #{tpu_custom_call.1} parent=1 // pred_region
      %16 = vsyncadd [#allocation3], 0
      %s17 = sshll.u32 %s0, 4
      %s18 = int_to_ptr.hbm [resolvable:$true] %s17
      %s19 = sshll.u32 [#allocation2], 4
      %s20 = int_to_ptr.vmem [resolvable:$true] %s19
      %25 = dma.hbm_to_vmem [thread:$0]  %s18, 256, %s20, [#allocation3], 128, 128, 8
    $region5: #{tpu_custom_call.1} parent=1 // pred_fallthru
      _
    // Predicated region
    $region6: #{tpu_custom_call.1} parent=1 // pred_check
      _
    $region7: #{tpu_custom_call.1} parent=1 // pred_check_branch
      %27 = sbr.rel (0) target = $region9
    $region8: #{tpu_custom_call.1} parent=1 // pred_region
      %29 = vsyncadd [#allocation6], 0
      %s31 = sshll.u32 %s1, 4
      %s32 = int_to_ptr.hbm [resolvable:$true] %s31
      %s33 = sshll.u32 [#allocation5], 4
      %s34 = int_to_ptr.vmem [resolvable:$true] %s33
      %36 = dma.hbm_to_vmem [thread:$0]  %s32, 64, %s34, [#allocation6]
    $region9: #{tpu_custom_call.1} parent=1 // pred_fallthru
      _
    // Predicated region
    $region10: #{tpu_custom_call.1} parent=1 // pred_check
      _
    $region11: #{tpu_custom_call.1} parent=1 // pred_check_branch
      %38 = sbr.rel (0) target = $region13
    $region12: #{tpu_custom_call.1} parent=1 // pred_region
      %40 = dma.done [#allocation3], 256
    $region13: #{tpu_custom_call.1} parent=1 // pred_fallthru
      _
    // Predicated region
    $region14: #{tpu_custom_call.1} parent=1 // pred_check
      _
    $region15: #{tpu_custom_call.1} parent=1 // pred_check_branch
      %42 = sbr.rel (0) target = $region17
    $region16: #{tpu_custom_call.1} parent=1 // pred_region
      %44 = dma.done [#allocation6], 64
    $region17: #{tpu_custom_call.1} parent=1 // pred_fallthru
      _
    %v45 = vld [vmem:[#allocation2] sm:$0xff]
    %v46 = vld [vmem:[#allocation2 + $0x8] sm:$0xff]
    %47 = vst [vmem:[#allocation7] sm:$0xff] %v45
    %48 = vst [vmem:[#allocation7 + $0x8] sm:$0xff] %v46
    %v49 = vld [vmem:[#allocation5] sm:$0xf]
    %50 = vst [vmem:[#allocation8] sm:$0xf] %v49
    // Predicated region
    $region18: #{tpu_custom_call.1} parent=1 // pred_check
      _
    $region19: #{tpu_custom_call.1} parent=1 // pred_check_branch
      %52 = sbr.rel (0) target = $region21
    $region20: #{tpu_custom_call.1} parent=1 // pred_region
      %54 = vsyncadd [#allocation4], 0
      %s55 = sshll.u32 [#allocation7], 4
      %s56 = int_to_ptr.vmem [resolvable:$true] %s55
      %s57 = sshll.u32 %s2, 4
      %s58 = int_to_ptr.hbm [resolvable:$true] %s57
      %63 = dma.vmem_to_hbm [thread:$0]  %s56, 256, %s58, [#allocation4], 128, 128, 8
    $region21: #{tpu_custom_call.1} parent=1 // pred_fallthru
      _
    // Predicated region
    $region22: #{tpu_custom_call.1} parent=1 // pred_check
      _
    $region23: #{tpu_custom_call.1} parent=1 // pred_check_branch
      %65 = sbr.rel (0) target = $region25
    $region24: #{tpu_custom_call.1} parent=1 // pred_region
      %67 = vsyncadd [#allocation9], 0
      %s69 = sshll.u32 [#allocation8], 4
      %s70 = int_to_ptr.vmem [resolvable:$true] %s69
      %s71 = sshll.u32 %s3, 4
      %s72 = int_to_ptr.hbm [resolvable:$true] %s71
      %74 = dma.vmem_to_hbm [thread:$0]  %s70, 64, %s72, [#allocation9]
    $region25: #{tpu_custom_call.1} parent=1 // pred_fallthru
      _
    // Predicated region
    $region26: #{tpu_custom_call.1} parent=1 // pred_check
      _
    $region27: #{tpu_custom_call.1} parent=1 // pred_check_branch
      %76 = sbr.rel (0) target = $region29
    $region28: #{tpu_custom_call.1} parent=1 // pred_region
      %78 = dma.done [#allocation4], 256
    $region29: #{tpu_custom_call.1} parent=1 // pred_fallthru
      _
    // Predicated region
    $region30: #{tpu_custom_call.1} parent=1 // pred_check
      _
    $region31: #{tpu_custom_call.1} parent=1 // pred_check_branch
      %80 = sbr.rel (0) target = $region33
    $region32: #{tpu_custom_call.1} parent=1 // pred_region
      %82 = dma.done [#allocation9], 64
    $region33: #{tpu_custom_call.1} parent=1 // pred_fallthru
      _
    %83 = vsyncpa [#allocation3], 1
    %84 = vsyncpa [#allocation6], 1
    %85 = vsyncpa [#allocation4], 1
    %86 = vsyncpa [#allocation9], 1

</llo_original>
